<compile_context>
chip_gen: v5e
topology: v5e:2x2
jax: 0.10.0
libtpu: 0.0.40
codegen_flags: <defaults>
</compile_context>

<pallas_src>
import functools

import numpy as np
import jax
import jax.numpy as jnp
from jax.experimental import pallas as pl
from jax.experimental.pallas import tpu as pltpu


def _focal_loss_kernel(logit_ref, target_ref, alpha_ref, out_ref, acc_ref, *,
                       gamma, smooth, apply_smooth, num_class, hw, use_alpha):
    s = pl.program_id(1)
    n_s = pl.num_programs(1)

    # Zero the per-batch-row vector accumulator on the first spatial tile.
    @pl.when(s == 0)
    def _():
        acc_ref[...] = jnp.zeros_like(acc_ref)

    x = logit_ref[0].astype(jnp.float32)      # (C, ts)  classes on sublanes
    tgt = target_ref[0]                       # (1, ts)  int32 class indices

    # Stable softmax pieces over the class axis (axis 0).
    m = jnp.max(x, axis=0, keepdims=True)                 # (1, ts)
    e = jnp.exp(x - m)                                     # (C, ts)
    sum_e = jnp.sum(e, axis=0, keepdims=True)              # (1, ts)

    # One-hot(target) as a boolean mask (scatter_ equivalent).
    cls = jax.lax.broadcasted_iota(jnp.int32, x.shape, 0)  # (C, ts)
    one_hot = cls == tgt                                   # (C, ts) bool

    # p_target without materializing the full softmax: e_t / sum_e.
    e_t = jnp.sum(jnp.where(one_hot, e, 0.0), axis=0, keepdims=True)
    p_t = e_t / sum_e                                      # (1, ts)

    # Label smoothing: clamp(one_hot, low, high) folded analytically:
    #   sum(clamp(one_hot, low, high) * p) = low + (high - low) * p_target
    if apply_smooth:
        low = smooth / (num_class - 1) if num_class > 1 else 0.0
        high = 1.0 - smooth
    else:
        low, high = 0.0, 1.0
    pt = low + (high - low) * p_t + smooth                 # (1, ts)
    logpt = jnp.log(pt)

    # Focal weight (1 - pt)^gamma, specialized for integer gamma (no pow/EUP).
    one_minus_pt = 1.0 - pt
    g = float(gamma)
    if g == 0.0:
        w = jnp.ones_like(pt)
    elif g.is_integer() and 1.0 <= g <= 8.0:
        w = one_minus_pt
        for _ in range(int(g) - 1):
            w = w * one_minus_pt
    else:
        w = jnp.power(one_minus_pt, g)

    loss = -w * logpt                                      # (1, ts)
    if use_alpha:
        # alpha[target] gather as a masked class-sum against the (C, 1) vector.
        a_row = jnp.sum(jnp.where(one_hot, alpha_ref[...], 0.0),
                        axis=0, keepdims=True)             # (1, ts)
        loss = loss * a_row

    # Mask out-of-range spatial columns of the (possibly partial) last tile.
    ts = x.shape[1]
    col = s * ts + jax.lax.broadcasted_iota(jnp.int32, (1, ts), 1)
    loss = jnp.where(col < hw, loss, 0.0)

    # Lane-dense vector accumulation; no per-step cross-lane reduce.
    acc_ref[...] = acc_ref[...] + loss

    # Single cross-lane reduce + store per batch row, on the last spatial tile.
    @pl.when(s == n_s - 1)
    def _():
        lane = jax.lax.broadcasted_iota(jnp.int32, (1, 128), 1)
        out_ref[0] = jnp.where(lane == 0, jnp.sum(acc_ref[...]), 0.0)


def focal_loss(logit_nchw, target, *, alpha=None, gamma=2.0, balance_index=0,
               smooth=1e-5, size_average=True, max_block_bytes=2 << 20):
    """JAX/Pallas equivalent of FocalLoss.forward (NCHW logits)."""
    if smooth is not None and (smooth < 0 or smooth > 1.0):
        raise ValueError("smooth value should be in [0,1]")

    N, C, H, W = logit_nchw.shape
    HW = H * W
    M = N * HW

    # Free, contiguous views — the NCHW->row transpose is fused into the
    # kernel's BlockSpec instead of costing an extra HBM pass.
    x = logit_nchw.reshape(N, C, HW)
    t = target.reshape(N, 1, HW).astype(jnp.int32)

    # alpha handling (same semantics as the module's __init__/forward).
    if alpha is None:
        alpha_vec = jnp.ones((C, 1), jnp.float32)
        use_alpha = False
    elif isinstance(alpha, (list, tuple, np.ndarray)):
        assert len(alpha) == C
        a = jnp.asarray(alpha, jnp.float32)
        alpha_vec = (a / a.sum()).reshape(C, 1)
        use_alpha = True
    elif isinstance(alpha, float):
        alpha_vec = jnp.full((C, 1), 1.0 - alpha, jnp.float32)
        alpha_vec = alpha_vec.at[balance_index, 0].set(alpha)
        use_alpha = True
    else:
        raise TypeError("Not support alpha type")

    # Spatial tile size: multiple of 128 lanes, logits block capped at a few MB
    # so double-buffered inputs fit scoped VMEM on v5e/v6e/v7x alike.
    itemsize = jnp.dtype(x.dtype).itemsize
    lanes = max(128, min(8192, (max_block_bytes // (C * itemsize)) // 128 * 128))
    ts = HW if HW <= lanes else lanes        # full extent (always legal) or 128k
    grid = (N, pl.cdiv(HW, ts))              # remainder handled by in-kernel mask

    apply_smooth = bool(smooth)
    smooth_val = float(smooth) if smooth else 0.0

    kernel = functools.partial(
        _focal_loss_kernel,
        gamma=float(gamma),
        smooth=smooth_val,
        apply_smooth=apply_smooth,
        num_class=C,
        hw=HW,
        use_alpha=use_alpha,
    )

    partials = pl.pallas_call(
        kernel,
        out_shape=jax.ShapeDtypeStruct((N, 1, 128), jnp.float32),
        grid_spec=pltpu.PrefetchScalarGridSpec(
            num_scalar_prefetch=0,
            grid=grid,
            in_specs=[
                pl.BlockSpec((1, C, ts), lambda n, s: (n, 0, s)),  # logits tile
                pl.BlockSpec((1, 1, ts), lambda n, s: (n, 0, s)),  # targets tile
                pl.BlockSpec((C, 1), lambda n, s: (0, 0)),         # alpha (resident)
            ],
            out_specs=pl.BlockSpec((1, 1, 128), lambda n, s: (n, 0, 0)),
            scratch_shapes=[pltpu.VMEM((1, ts), jnp.float32)],     # vector accumulator
        ),
        compiler_params=pltpu.CompilerParams(
            dimension_semantics=("parallel", "arbitrary"),  # batch parallel, spatial reduce
            vmem_limit_bytes=32 * 1024 * 1024,
        ),
    )(x, t, alpha_vec)

    loss = jnp.sum(partials)
    if size_average:
        loss = loss / M
    # TODO(synk): size_average=False returns the summed loss, not the
    # per-element loss tensor the PyTorch module returns in that mode.
    return loss


def _focal_loss_ref(logit_nchw, target, *, alpha=None, gamma=2.0,
                    balance_index=0, smooth=1e-5):
    """Pure-JAX reference of the PyTorch forward pass."""
    N, C, H, W = logit_nchw.shape
    x = jnp.transpose(logit_nchw, (0, 2, 3, 1)).reshape(-1, C).astype(jnp.float32)
    p = jax.nn.softmax(x, axis=1)
    t = target.reshape(-1).astype(jnp.int32)
    one_hot = jax.nn.one_hot(t, C, dtype=jnp.float32)
    if smooth:
        one_hot = jnp.clip(one_hot, smooth / (C - 1), 1.0 - smooth)
    pt = jnp.sum(one_hot * p, axis=1) + (float(smooth) if smooth else 0.0)
    logpt = jnp.log(pt)
    if alpha is None:
        alpha_vec = jnp.ones((C,), jnp.float32)
    elif isinstance(alpha, (list, tuple, np.ndarray)):
        a = jnp.asarray(alpha, jnp.float32)
        alpha_vec = a / a.sum()
    else:
        alpha_vec = jnp.full((C,), 1.0 - alpha, jnp.float32).at[balance_index].set(alpha)
    alpha_row = alpha_vec[t]
    loss = -alpha_row * jnp.power(1.0 - pt, float(gamma)) * logpt
    return jnp.mean(loss)


if __name__ == "__main__":
    key = jax.random.PRNGKey(0)

    # Test 1: default module config (alpha=None, gamma=2, smooth=1e-5).
    k1, k2, key = (*jax.random.split(key, 2), key)
    N, C, H, W = 2, 4, 16, 16
    logit = jax.random.normal(k1, (N, C, H, W), dtype=jnp.float32)
    target = jax.random.randint(k2, (N, 1, H, W), 0, C, dtype=jnp.int32)
    out = jax.block_until_ready(focal_loss(logit, target))
    ref = _focal_loss_ref(logit, target)
    assert jnp.allclose(out, ref, rtol=2e-5, atol=1e-6), (out, ref)

    # Test 2: list alpha, integer gamma=3, different C / spatial extent.
    k1, k2, key = (*jax.random.split(key, 2), key)
    N2, C2, H2, W2 = 1, 6, 8, 24
    alpha2 = [1.0, 2.0, 3.0, 1.5, 0.5, 2.0]
    logit2 = jax.random.normal(k1, (N2, C2, H2, W2), dtype=jnp.float32)
    target2 = jax.random.randint(k2, (N2, 1, H2, W2), 0, C2, dtype=jnp.int32)
    out2 = jax.block_until_ready(focal_loss(logit2, target2, alpha=alpha2, gamma=3.0))
    ref2 = _focal_loss_ref(logit2, target2, alpha=alpha2, gamma=3.0)
    assert jnp.allclose(out2, ref2, rtol=2e-5, atol=1e-6), (out2, ref2)

    # Test 3: float alpha + non-integer gamma (pow fallback path).
    k1, k2, key = (*jax.random.split(key, 2), key)
    logit3 = jax.random.normal(k1, (N, C, H, W), dtype=jnp.float32)
    target3 = jax.random.randint(k2, (N, 1, H, W), 0, C, dtype=jnp.int32)
    out3 = jax.block_until_ready(
        focal_loss(logit3, target3, alpha=0.25, balance_index=1, gamma=1.5))
    ref3 = _focal_loss_ref(logit3, target3, alpha=0.25, balance_index=1, gamma=1.5)
    assert jnp.allclose(out3, ref3, rtol=2e-5, atol=1e-6), (out3, ref3)

    print("KERNEL_OK")
</pallas_src>

<mosaic_0001>
module attributes {stable_mosaic.version = 11 : i64} {
  func.func @_focal_loss_kernel(%arg0: i32, %arg1: i32, %arg2: memref<1x4x256xf32, #tpu.memory_space<vmem>>, %arg3: memref<1x1x256xi32, #tpu.memory_space<vmem>>, %arg4: memref<4x1xf32, #tpu.memory_space<vmem>>, %arg5: memref<1x1x128xf32, #tpu.memory_space<vmem>>, %arg6: memref<1x256xf32, #tpu.memory_space<vmem>>) attributes {dimension_semantics = [#tpu.dimension_semantics<parallel>, #tpu.dimension_semantics<arbitrary>], iteration_bounds = array<i64: 2, 1>, scalar_prefetch = 0 : i64, scratch_operands = 1 : i64, tpu.core_type = #tpu.core_type<tc>, window_params = [{transform_indices = @transform_0, window_bounds = array<i64: 1, 4, 256>}, {transform_indices = @transform_1, window_bounds = array<i64: 1, 1, 256>}, {pipeline_mode = #tpu.pipeline_mode<synchronous>, transform_indices = @transform_2, window_bounds = array<i64: 4, 1>}, {transform_indices = @transform_3, window_bounds = array<i64: 1, 1, 128>}]} {
    %c0_i32 = arith.constant 0 : i32
    %0 = arith.cmpi eq, %arg1, %c0_i32 : i32
    %1 = arith.extui %0 : i1 to i32
    %c0_i32_0 = arith.constant 0 : i32
    %2 = arith.cmpi ne, %1, %c0_i32_0 : i32
    scf.if %2 {
      %cst_22 = arith.constant 0.000000e+00 : f32
      %49 = vector.broadcast %cst_22 : f32 to vector<1x256xf32>
      %c0_23 = arith.constant 0 : index
      %c0_24 = arith.constant 0 : index
      %50 = vector.load %arg6[%c0_23, %c0_24] : memref<1x256xf32, #tpu.memory_space<vmem>>, vector<1x256xf32>
      tpu.vector_store %arg6[%c0_23, %c0_24], %49 {strides = array<i32>} : memref<1x256xf32, #tpu.memory_space<vmem>>, vector<1x256xf32>,
    } else {
    }
    %c0 = arith.constant 0 : index
    %c0_1 = arith.constant 0 : index
    %c0_2 = arith.constant 0 : index
    %3 = vector.load %arg2[%c0, %c0_1, %c0_2] : memref<1x4x256xf32, #tpu.memory_space<vmem>>, vector<1x4x256xf32>
    %4 = vector.shape_cast %3 : vector<1x4x256xf32> to vector<4x256xf32>
    %c0_3 = arith.constant 0 : index
    %c0_4 = arith.constant 0 : index
    %c0_5 = arith.constant 0 : index
    %5 = vector.load %arg3[%c0_3, %c0_4, %c0_5] : memref<1x1x256xi32, #tpu.memory_space<vmem>>, vector<1x1x256xi32>
    %6 = vector.shape_cast %5 : vector<1x1x256xi32> to vector<1x256xi32>
    %cst = arith.constant dense<0xFF800000> : vector<256xf32>
    %7 = vector.multi_reduction <maximumf>, %4, %cst [0] : vector<4x256xf32> to vector<256xf32>
    %8 = vector.shape_cast %7 : vector<256xf32> to vector<1x256xf32>
    %9 = vector.broadcast %8 : vector<1x256xf32> to vector<4x256xf32>
    %10 = arith.subf %4, %9 : vector<4x256xf32>
    %11 = math.exp %10 : vector<4x256xf32>
    %cst_6 = arith.constant dense<0.000000e+00> : vector<256xf32>
    %12 = vector.multi_reduction <add>, %11, %cst_6 [0] : vector<4x256xf32> to vector<256xf32>
    %13 = vector.shape_cast %12 : vector<256xf32> to vector<1x256xf32>
    %14 = tpu.iota {dimensions = array<i32: 0>} : vector<4x256xi32>
    %15 = vector.broadcast %6 : vector<1x256xi32> to vector<4x256xi32>
    %16 = arith.cmpi eq, %14, %15 : vector<4x256xi32>
    %cst_7 = arith.constant 0.000000e+00 : f32
    %17 = vector.broadcast %cst_7 : f32 to vector<4x256xf32>
    %18 = arith.select %16, %11, %17 : vector<4x256xi1>, vector<4x256xf32>
    %cst_8 = arith.constant dense<0.000000e+00> : vector<256xf32>
    %19 = vector.multi_reduction <add>, %18, %cst_8 [0] : vector<4x256xf32> to vector<256xf32>
    %20 = vector.shape_cast %19 : vector<256xf32> to vector<1x256xf32>
    %21 = arith.divf %20, %13 : vector<1x256xf32>
    %cst_9 = arith.constant 0.999986648 : f32
    %22 = vector.broadcast %cst_9 : f32 to vector<1x256xf32>
    %23 = arith.mulf %22, %21 : vector<1x256xf32>
    %cst_10 = arith.constant 3.33333332E-6 : f32
    %24 = vector.broadcast %cst_10 : f32 to vector<1x256xf32>
    %25 = arith.addf %24, %23 : vector<1x256xf32>
    %cst_11 = arith.constant 9.99999974E-6 : f32
    %26 = vector.broadcast %cst_11 : f32 to vector<1x256xf32>
    %27 = arith.addf %25, %26 : vector<1x256xf32>
    %28 = math.log %27 : vector<1x256xf32>
    %cst_12 = arith.constant 1.000000e+00 : f32
    %29 = vector.broadcast %cst_12 : f32 to vector<1x256xf32>
    %30 = arith.subf %29, %27 : vector<1x256xf32>
    %31 = arith.mulf %30, %30 : vector<1x256xf32>
    %cst_13 = arith.constant 0.000000e+00 : f32
    %32 = vector.broadcast %cst_13 : f32 to vector<1x256xf32>
    %33 = arith.subf %32, %31 : vector<1x256xf32>
    %34 = arith.mulf %33, %28 : vector<1x256xf32>
    %c256_i32 = arith.constant 256 : i32
    %35 = arith.muli %arg1, %c256_i32 : i32
    %36 = tpu.iota {dimensions = array<i32: 1>} : vector<1x256xi32>
    %37 = vector.broadcast %35 : i32 to vector<1x256xi32>
    %38 = arith.addi %37, %36 : vector<1x256xi32>
    %c256_i32_14 = arith.constant 256 : i32
    %39 = vector.broadcast %c256_i32_14 : i32 to vector<1x256xi32>
    %40 = arith.cmpi slt, %38, %39 : vector<1x256xi32>
    %cst_15 = arith.constant 0.000000e+00 : f32
    %41 = vector.broadcast %cst_15 : f32 to vector<1x256xf32>
    %42 = arith.select %40, %34, %41 : vector<1x256xi1>, vector<1x256xf32>
    %c0_16 = arith.constant 0 : index
    %c0_17 = arith.constant 0 : index
    %43 = vector.load %arg6[%c0_16, %c0_17] : memref<1x256xf32, #tpu.memory_space<vmem>>, vector<1x256xf32>
    %44 = arith.addf %43, %42 : vector<1x256xf32>
    %c0_18 = arith.constant 0 : index
    %c0_19 = arith.constant 0 : index
    %45 = vector.load %arg6[%c0_18, %c0_19] : memref<1x256xf32, #tpu.memory_space<vmem>>, vector<1x256xf32>
    tpu.vector_store %arg6[%c0_18, %c0_19], %44 {strides = array<i32>} : memref<1x256xf32, #tpu.memory_space<vmem>>, vector<1x256xf32>,
    %c0_i32_20 = arith.constant 0 : i32
    %46 = arith.cmpi eq, %arg1, %c0_i32_20 : i32
    %47 = arith.extui %46 : i1 to i32
    %c0_i32_21 = arith.constant 0 : i32
    %48 = arith.cmpi ne, %47, %c0_i32_21 : i32
    scf.if %48 {
      %49 = tpu.iota {dimensions = array<i32: 1>} : vector<1x128xi32>
      %c0_i32_22 = arith.constant 0 : i32
      %50 = vector.broadcast %c0_i32_22 : i32 to vector<1x128xi32>
      %51 = arith.cmpi eq, %49, %50 : vector<1x128xi32>
      %c0_23 = arith.constant 0 : index
      %c0_24 = arith.constant 0 : index
      %52 = vector.load %arg6[%c0_23, %c0_24] : memref<1x256xf32, #tpu.memory_space<vmem>>, vector<1x256xf32>
      %53 = vector.shape_cast %52 : vector<1x256xf32> to vector<1x1x256xf32>
      %cst_25 = arith.constant dense<0.000000e+00> : vector<1xf32>
      %54 = vector.multi_reduction <add>, %53, %cst_25 [1, 2] : vector<1x1x256xf32> to vector<1xf32>
      %55 = vector.shape_cast %54 : vector<1xf32> to vector<1x1x1xf32>
      %56 = vector.extract %55[0, 0, 0] : f32 from vector<1x1x1xf32>
      %cst_26 = arith.constant 0.000000e+00 : f32
      %57 = vector.broadcast %56 : f32 to vector<1x128xf32>
      %58 = vector.broadcast %cst_26 : f32 to vector<1x128xf32>
      %59 = arith.select %51, %57, %58 : vector<1x128xi1>, vector<1x128xf32>
      %c0_27 = arith.constant 0 : index
      %c0_28 = arith.constant 0 : index
      %c0_29 = arith.constant 0 : index
      %60 = vector.load %arg5[%c0_27, %c0_28, %c0_29] : memref<1x1x128xf32, #tpu.memory_space<vmem>>, vector<1x1x128xf32>
      %61 = vector.shape_cast %60 : vector<1x1x128xf32> to vector<1x128xf32>
      %62 = vector.shape_cast %59 : vector<1x128xf32> to vector<1x1x128xf32>
      tpu.vector_store %arg5[%c0_27, %c0_28, %c0_29], %62 {strides = array<i32>} : memref<1x1x128xf32, #tpu.memory_space<vmem>>, vector<1x1x128xf32>,
    } else {
    }
    return
  }
  func.func @transform_0(%arg0: i32, %arg1: i32) -> (i32, i32, i32) {
    %c0_i32 = arith.constant 0 : i32
    %c0_i32_0 = arith.constant 0 : i32
    return %arg0, %c0_i32, %arg1 : i32, i32, i32
  }
  func.func @transform_1(%arg0: i32, %arg1: i32) -> (i32, i32, i32) {
    %c0_i32 = arith.constant 0 : i32
    %c0_i32_0 = arith.constant 0 : i32
    return %arg0, %c0_i32, %arg1 : i32, i32, i32
  }
  func.func @transform_2(%arg0: i32, %arg1: i32) -> (i32, i32) {
    %c0_i32 = arith.constant 0 : i32
    %c0_i32_0 = arith.constant 0 : i32
    %c0_i32_1 = arith.constant 0 : i32
    return %c0_i32, %c0_i32_0 : i32, i32
  }
  func.func @transform_3(%arg0: i32, %arg1: i32) -> (i32, i32, i32) {
    %c0_i32 = arith.constant 0 : i32
    %c0_i32_0 = arith.constant 0 : i32
    %c0_i32_1 = arith.constant 0 : i32
    return %arg0, %c0_i32, %c0_i32_0 : i32, i32, i32
  }
}

</mosaic_0001>

<llo_original>
// kernel: tpu_custom_call.1
$region0: #{tpu_custom_call.1}
  #allocation0 [shape = 'u32[]', space=smem, size = 0x4, offset = 0x4, fixed_abs, tag = 'smem constant byte address 0x4 - core index']
  #allocation1 [shape = 'u32[72,128]{1,0:T(1,128)}', space=vmem, size = 0x9000, scoped, tag = 'internal scratch']
  #allocation2 [shape = 'f32[1,256]{1,0:T(1,128)}', space=vmem, size = 0x400, scoped, tag = 'scratch operand']
  %s0 = inlined_call_operand.hbm [shape: f32[2,4,256], index: 0, kind: input, shape index: {}]
  %s1 = inlined_call_operand.vmem [shape: s32[2,1,256], index: 1, kind: input, shape index: {}]
  %s2 = inlined_call_operand.vmem [shape: f32[4,1], index: 2, kind: input, shape index: {}]
  %s3 = inlined_call_operand.hbm [shape: f32[2,1,128], index: 3, kind: output, shape index: {}]
  %s4 = sld [smem:[#allocation0]]
  $region57: #{tpu_custom_call.1} parent=0
    _
  %s6 = ssub.s32 1, %s4
  %s7 = scalar_select 0, %s6, %s4
  $region1: #{tpu_custom_call.1} parent=0
    #allocation3 [shape = 'u8[8192]{0}', space=vmem, size = 0x2000, scoped, tag = 'input window, operand 0']
    #allocation4 [shape = 's32[2]{0}', space=sflag, size = 0x8, scoped, tag = 'scoped memory for tpu_custom_call.1']
    #allocation5 [shape = 's32[2]{0}', space=sflag, size = 0x8, scoped, tag = 'scoped memory for tpu_custom_call.1']
    #allocation6 [shape = 'u8[1024]{0}', space=vmem, size = 0x400, scoped, tag = 'output window, operand 0']
    %8 = vsyncpa [#allocation4], 0
    %s9 = scalar_lea.sflag [#allocation4], 1
    %10 = vsyncpa %s9, 0
    %11 = vsyncpa [#allocation5], 0
    %s12 = scalar_lea.sflag [#allocation5], 1
    %13 = vsyncpa %s12, 0
    loop: start=0, step=1, limit=4
    $region2: #{tpu_custom_call.1} parent=1 // loop_pre_header
      _
    $region3: #{tpu_custom_call.1} parent=1 // loop_header
      %s15 = sphi 0, %s19
      %p16 = scmp.ge.s32.totalorder %s15, 4
      %s22 = sphi 0, %s34
      %s23 = sphi 0, %s30
      %s24 = sphi 0, %s22
      %s25 = sphi 0, %s23
      %s26 = sphi 0, %s24
      %s27 = sphi 0, %s25
      %s39 = sphi 0, %s41
      %s42 = sphi 0, %s39
      %s43 = sphi 0, %s42
      %s59 = sphi 0, %s43
      %s67 = sphi 0, %s69
      %s70 = sphi 0, %s67
      %s71 = sphi 0, %s70
      %s87 = sphi 0, %s71
      %s91 = sphi 0, %s91
      %s93 = sphi 0, %s91
      %s94 = sphi 0, %s93
      %s108 = sphi 0, %s94
      %s114 = sphi 0, %s116
      %s117 = sphi 0, %s114
      %s118 = sphi 0, %s117
      %s134 = sphi 0, %s118
    $region4: #{tpu_custom_call.1} parent=1 // loop_header_branch
      %18 = sbr.rel (%p16) target = $region8
    $region5: #{tpu_custom_call.1} parent=1 // loop_body
      %s20 = ssub.s32 %s15, 1
      %s21 = ssub.s32 %s15, 2
      %s28 = sadd.s32 1, %s23
      %p29 = scmp.ge.s32.totalorder %s28, 1
      %s30 = scalar_select %p29, 0, %s28
      %s31 = sadd.s32 1, %s22
      %s32 = scalar_select %p29, %s31, %s22
      %p33 = scmp.ge.s32.totalorder %s32, 2
      %s34 = scalar_select %p33, 0, %s32
      %s35 = ssub.s32 %s22, %s34
      %s36 = ssub.s32 %s23, %s30
      %s37 = sor.u32 %s35, %s36
      %p38 = scmp.eq.s32.totalorder %s37, 0
      %s40 = sadd.s32 %s39, 1
      %s41 = scalar_select %p38, %s39, %s40
      %p44 = pneg %p38
      %p45 = scmp.eq.s32.totalorder %s15, 1
      %p46 = por %p44, %p45
      %p47 = scmp.ne.s32.totalorder %s39, %s42
      %p48 = scmp.eq.s32.totalorder %s15, 0
      %p49 = por %p47, %p48
      %p50 = scmp.ne.s32.totalorder %s39, %s42
      %p51 = scmp.eq.s32.totalorder %s20, 1
      %p52 = por %p50, %p51
      %p53 = scmp.ne.s32.totalorder %s42, %s43
      %p54 = scmp.eq.s32.totalorder %s20, 0
      %p55 = por %p53, %p54
      %p56 = scmp.ne.s32.totalorder %s42, %s43
      %p57 = scmp.eq.s32.totalorder %s21, 1
      %p58 = por %p56, %p57
      %p60 = scmp.ne.s32.totalorder %s43, %s59
      %p61 = scmp.eq.s32.totalorder %s21, 0
      %p62 = por %p60, %p61
      %s63 = ssub.s32 %s22, %s34
      %s64 = ssub.s32 %s23, %s30
      %s65 = sor.u32 %s63, %s64
      %p66 = scmp.eq.s32.totalorder %s65, 0
      %s68 = sadd.s32 %s67, 1
      %s69 = scalar_select %p66, %s67, %s68
      %p72 = pneg %p66
      %p73 = scmp.eq.s32.totalorder %s15, 1
      %p74 = por %p72, %p73
      %p75 = scmp.ne.s32.totalorder %s67, %s70
      %p76 = scmp.eq.s32.totalorder %s15, 0
      %p77 = por %p75, %p76
      %p78 = scmp.ne.s32.totalorder %s67, %s70
      %p79 = scmp.eq.s32.totalorder %s20, 1
      %p80 = por %p78, %p79
      %p81 = scmp.ne.s32.totalorder %s70, %s71
      %p82 = scmp.eq.s32.totalorder %s20, 0
      %p83 = por %p81, %p82
      %p84 = scmp.ne.s32.totalorder %s70, %s71
      %p85 = scmp.eq.s32.totalorder %s21, 1
      %p86 = por %p84, %p85
      %p88 = scmp.ne.s32.totalorder %s71, %s87
      %p89 = scmp.eq.s32.totalorder %s21, 0
      %p90 = por %p88, %p89
      %s92 = sadd.s32 %s91, 1
      %p95 = scmp.eq.s32.totalorder %s15, 1
      %p96 = scmp.ne.s32.totalorder %s91, %s93
      %p97 = scmp.eq.s32.totalorder %s15, 0
      %p98 = por %p96, %p97
      %p99 = scmp.ne.s32.totalorder %s91, %s93
      %p100 = scmp.eq.s32.totalorder %s20, 1
      %p101 = por %p99, %p100
      %p102 = scmp.ne.s32.totalorder %s93, %s94
      %p103 = scmp.eq.s32.totalorder %s20, 0
      %p104 = por %p102, %p103
      %p105 = scmp.ne.s32.totalorder %s93, %s94
      %p106 = scmp.eq.s32.totalorder %s21, 1
      %p107 = por %p105, %p106
      %p109 = scmp.ne.s32.totalorder %s94, %s108
      %p110 = scmp.eq.s32.totalorder %s21, 0
      %p111 = por %p109, %p110
      %s112 = ssub.s32 %s22, %s34
      %p113 = scmp.eq.s32.totalorder %s112, 0
      %s115 = sadd.s32 %s114, 1
      %s116 = scalar_select %p113, %s114, %s115
      %p119 = pneg %p113
      %p120 = scmp.eq.s32.totalorder %s15, 1
      %p121 = por %p119, %p120
      %p122 = scmp.ne.s32.totalorder %s114, %s117
      %p123 = scmp.eq.s32.totalorder %s15, 0
      %p124 = por %p122, %p123
      %p125 = scmp.ne.s32.totalorder %s114, %s117
      %p126 = scmp.eq.s32.totalorder %s20, 1
      %p127 = por %p125, %p126
      %p128 = scmp.ne.s32.totalorder %s117, %s118
      %p129 = scmp.eq.s32.totalorder %s20, 0
      %p130 = por %p128, %p129
      %p131 = scmp.ne.s32.totalorder %s117, %s118
      %p132 = scmp.eq.s32.totalorder %s21, 1
      %p133 = por %p131, %p132
      %p135 = scmp.ne.s32.totalorder %s118, %s134
      %p136 = scmp.eq.s32.totalorder %s21, 0
      %p137 = por %p135, %p136
      %p138 = scmp.le.s32.totalorder 1, %s15
      %p139 = scmp.lt.s32.totalorder %s15, 3
      %p140 = pnand %p138, %p139
      %p141 = pneg %p140
      // Predicated region
      $region9: #{tpu_custom_call.1} parent=5 // pred_check
        _
      $region10: #{tpu_custom_call.1} parent=5 // pred_check_branch
        %143 = sbr.rel (%p140) target = $region12
      $region11: #{tpu_custom_call.1} parent=5 // pred_region
        %s144 = ssub.s32 %s15, 1
        // Predicated region
        $region13: #{tpu_custom_call.1} parent=11 // pred_check
          %p145 = pneg %p104
        $region14: #{tpu_custom_call.1} parent=11 // pred_check_branch
          %147 = sbr.rel (%p145) target = $region16
        $region15: #{tpu_custom_call.1} parent=11 // pred_region
          _
        $region16: #{tpu_custom_call.1} parent=11 // pred_fallthru
          _
      $region12: #{tpu_custom_call.1} parent=5 // pred_fallthru
        _
      %p148 = scmp.lt.s32.totalorder %s15, 2
      // Predicated region
      $region17: #{tpu_custom_call.1} parent=5 // pred_check
        %p149 = pneg %p148
      $region18: #{tpu_custom_call.1} parent=5 // pred_check_branch
        %151 = sbr.rel (%p149) target = $region20
      $region19: #{tpu_custom_call.1} parent=5 // pred_region
        // Predicated region
        $region21: #{tpu_custom_call.1} parent=19 // pred_check
          %p152 = pneg %p49
        $region22: #{tpu_custom_call.1} parent=19 // pred_check_branch
          %154 = sbr.rel (%p152) target = $region24
        $region23: #{tpu_custom_call.1} parent=19 // pred_region
          %s155 = sand.u32 %s39, 1
          %s156 = scalar_lea.sflag [#allocation4], %s155
          %s157 = sand.u32 %s39, 1
          %s158 = smul.addr %s157, 8
          %s159 = scalar_lea.vmem [#allocation3], %s158
          %s160 = smul.u32 2, %s23
          %162 = vsyncadd %s156, 0
          %s163 = smul.addr %s22, 2
          %s164 = sadd.s32 %s160, %s163
          %s165 = smul.addr %s164, 4
          %s166 = scalar_lea.hbm %s0, %s165
          %s168 = sshll.u32 %s166, 4
          %s169 = int_to_ptr.hbm [resolvable:$true] %s168
          %s170 = sshll.u32 %s159, 4
          %s171 = int_to_ptr.vmem [resolvable:$true] %s170
          %173 = dma.hbm_to_vmem [thread:$0]  %s169, 128, %s171, %s156
        $region24: #{tpu_custom_call.1} parent=19 // pred_fallthru
          _
        // Predicated region
        $region25: #{tpu_custom_call.1} parent=19 // pred_check
          %p174 = pneg %p77
        $region26: #{tpu_custom_call.1} parent=19 // pred_check_branch
          %176 = sbr.rel (%p174) target = $region28
        $region27: #{tpu_custom_call.1} parent=19 // pred_region
          %s177 = smul.u32 2, %s23
          %p178 = scmp.lt.s32.totalorder %s22, 1
          %s179 = scalar_select %p178, %s22, 1
          %p180 = scmp.lt.s32.totalorder %s177, 1
          %s181 = scalar_select %p180, %s177, 1
          %s182 = smul.addr %s179, 2
          %s183 = sadd.s32 %s181, %s182
          %s184 = scalar_lea.vmem %s1, %s183
          %s185 = smul.u32 2, %s23
        $region28: #{tpu_custom_call.1} parent=19 // pred_fallthru
          _
      $region20: #{tpu_custom_call.1} parent=5 // pred_fallthru
        _
      %p186 = scmp.le.s32.totalorder 1, %s15
      %p187 = scmp.lt.s32.totalorder %s15, 3
      %p188 = pnand %p186, %p187
      %p189 = pneg %p188
      // Predicated region
      $region29: #{tpu_custom_call.1} parent=5 // pred_check
        _
      $region30: #{tpu_custom_call.1} parent=5 // pred_check_branch
        %191 = sbr.rel (%p188) target = $region32
      $region31: #{tpu_custom_call.1} parent=5 // pred_region
        %s192 = ssub.s32 %s15, 1
        %s193 = sand.u32 %s42, 1
        %s194 = scalar_lea.sflag [#allocation4], %s193
        %s195 = sand.u32 %s42, 1
        %s196 = smul.addr %s195, 8
        %s197 = scalar_lea.vmem [#allocation3], %s196
        // Predicated region
        $region33: #{tpu_custom_call.1} parent=31 // pred_check
          %p198 = pneg %p55
        $region34: #{tpu_custom_call.1} parent=31 // pred_check_branch
          %200 = sbr.rel (%p198) target = $region36
        $region35: #{tpu_custom_call.1} parent=31 // pred_region
          %202 = dma.done %s194, 128
        $region36: #{tpu_custom_call.1} parent=31 // pred_fallthru
          _
        %s203 = sand.u32 %s42, 1
        %s204 = scalar_lea.sflag [#allocation4], %s203
        %s205 = sand.u32 %s42, 1
        %s206 = smul.addr %s205, 8
        %s207 = scalar_lea.vmem [#allocation3], %s206
        %p208 = pneg %p55
        %p209 = pneg %p52
        %s210 = smul.u32 2, %s25
        %p211 = scmp.lt.s32.totalorder %s24, 1
        %s212 = scalar_select %p211, %s24, 1
        %p213 = scmp.lt.s32.totalorder %s210, 1
        %s214 = scalar_select %p213, %s210, 1
        %s215 = smul.addr %s212, 2
        %s216 = sadd.s32 %s214, %s215
        %s217 = scalar_lea.vmem %s1, %s216
        %p218 = pneg %p83
        %p219 = pneg %p80
        %p220 = pneg %p104
        %p221 = pneg %p101
        %p222 = pneg %p130
        %p223 = pneg %p127
        %s224 = sand.u32 %s117, 1
        %s225 = scalar_lea.sflag [#allocation5], %s224
        %s226 = sand.u32 %s117, 1
        %s227 = scalar_lea.vmem [#allocation6], %s226
        %s228 = smul.u32 2, %s25
        %s229 = smul.u32 2, %s25
        %p230 = scmp.lt.s32.totalorder %s24, 1
        %s231 = scalar_select %p230, %s24, 1
        %p232 = scmp.lt.s32.totalorder %s229, 1
        %s233 = scalar_select %p232, %s229, 1
        %s234 = smul.addr %s231, 2
        %s235 = sadd.s32 %s233, %s234
        %s236 = scalar_lea.vmem %s1, %s235
        %s237 = smul.u32 2, %s25
        %p238 = scmp.eq.s32.totalorder %s25, 0
        // Predicated region
        $region37: #{tpu_custom_call.1} parent=31 // pred_check
          %p239 = pneg %p238
        $region38: #{tpu_custom_call.1} parent=31 // pred_check_branch
          %241 = sbr.rel (%p239) target = $region40
        $region39: #{tpu_custom_call.1} parent=31 // pred_region
          %v242 = vlaneseq
          %vm243 = vcmp.ge.s32.totalorder %v242, 0
          %vm244 = vcmp.lt.s32.totalorder %v242, 256
          %vm245 = vmand %vm243, %vm244
          %246 = vst.msk [vmem:[#allocation2] sm:$0x3] %vm245, 0.0
        $region40: #{tpu_custom_call.1} parent=31 // pred_fallthru
          _
        %v247 = vld [vmem:[%s197] sm:$0xff]
        %v248 = vld [vmem:[%s236] sm:$0x3]
        %250 = vst [vmem:[#allocation1] ss:$2 sm:$0xff] %v247
        %v251 = vld.sshfl [vmem:[#allocation1] sm:$0xff pattern:$0x75316420]
        %v252 = vld.sshfl [vmem:[#allocation1 + $0x8] sm:$0xff pattern:$0x75316420]
        %vm255 = vcmask 1043456
        %v256 = vsel %vm255, %v251, -inf
        %v257 = vrot.slane %v256, 4
        %v258 = vmax.f32 %v256, %v257
        %v259 = vrot.slane %v258, 2
        %v260 = vmax.f32 %v258, %v259
        %v261 = vrot.slane %v260, 1
        %v262 = vmax.f32 %v260, %v261
        %v263 = vsel %vm255, %v252, -inf
        %v264 = vrot.slane %v263, 4
        %v265 = vmax.f32 %v263, %v264
        %v266 = vrot.slane %v265, 2
        %v267 = vmax.f32 %v265, %v266
        %v268 = vrot.slane %v267, 1
        %v269 = vmax.f32 %v267, %v268
        %v272 = vrot.slane %v269, 4
        %v273 = vsel %vm255, %v262, %v272
        %v275 = vsub.f32 %v247, %v273
        %v276 = vmul.f32 %v275, 1.442695
        %v277 = vpow.pop %v276
        %279 = vst [vmem:[#allocation1] ss:$2 sm:$0xff] %v277
        %v280 = vld.sshfl [vmem:[#allocation1] sm:$0xff pattern:$0x75316420]
        %v281 = vld.sshfl [vmem:[#allocation1 + $0x8] sm:$0xff pattern:$0x75316420]
        %v284 = vsel %vm255, %v280, 0.0
        %v285 = vrot.slane %v284, 4
        %v286 = vadd.f32 %v284, %v285
        %v287 = vrot.slane %v286, 2
        %v288 = vadd.f32 %v286, %v287
        %v289 = vrot.slane %v288, 1
        %v290 = vadd.f32 %v288, %v289
        %v291 = vsel %vm255, %v281, 0.0
        %v292 = vrot.slane %v291, 4
        %v293 = vadd.f32 %v291, %v292
        %v294 = vrot.slane %v293, 2
        %v295 = vadd.f32 %v293, %v294
        %v296 = vrot.slane %v295, 1
        %v297 = vadd.f32 %v295, %v296
        %v298 = vlaneseq
        %v299 = vshrl.u32 %v298, 7
        %v300 = vperm.slane %v248, 0
        %v301 = vperm.slane %v248, 1
        %vm302 = vcmp.eq.s32.totalorder %v299, %v300
        %vm303 = vcmp.eq.s32.totalorder %v299, %v301
        %304 = vst [vmem:[#allocation1] ss:$2 sm:$0xff] %v277
        %v305 = vld.sshfl [vmem:[#allocation1] sm:$0xff pattern:$0x75316420]
        %v306 = vld.sshfl [vmem:[#allocation1 + $0x8] sm:$0xff pattern:$0x75316420]
        %v309 = vsel %vm302, %v305, 0.0
        %v310 = vsel %vm303, %v306, 0.0
        %v311 = vsel %vm255, %v309, 0.0
        %v312 = vrot.slane %v311, 4
        %v313 = vadd.f32 %v311, %v312
        %v314 = vrot.slane %v313, 2
        %v315 = vadd.f32 %v313, %v314
        %v316 = vrot.slane %v315, 1
        %v317 = vadd.f32 %v315, %v316
        %v318 = vsel %vm255, %v310, 0.0
        %v319 = vrot.slane %v318, 4
        %v320 = vadd.f32 %v318, %v319
        %v321 = vrot.slane %v320, 2
        %v322 = vadd.f32 %v320, %v321
        %v323 = vrot.slane %v322, 1
        %v324 = vadd.f32 %v322, %v323
        %v325 = vrcp.pop %v290
        %v326 = vmul.f32 %v290, %v325
        %v327 = vsub.f32 1.0, %v326
        %v328 = vmul.f32 %v325, %v327
        %v329 = vadd.f32 %v325, %v328
        %vm330 = vweird.f32 %v290
        %vm331 = vweird.f32 %v325
        %vm332 = vmor %vm330, %vm331
        %v333 = vsel %vm332, %v325, %v329
        %v334 = vand.u32 2147483647, %v290
        %vm335 = vcmp.eq.f32.partialorder %v334, 8.507059e+37
        %v336 = vand.u32 %v290, 2147483648
        %v337 = vor.u32 1.1754944e-38, %v336
        %v338 = vsel %vm335, %v337, %v333
        %v339 = vmul.f32 %v317, %v338
        %v340 = vrcp.pop %v297
        %v341 = vmul.f32 %v297, %v340
        %v342 = vsub.f32 1.0, %v341
        %v343 = vmul.f32 %v340, %v342
        %v344 = vadd.f32 %v340, %v343
        %vm345 = vweird.f32 %v297
        %vm346 = vweird.f32 %v340
        %vm347 = vmor %vm345, %vm346
        %v348 = vsel %vm347, %v340, %v344
        %v349 = vand.u32 2147483647, %v297
        %vm350 = vcmp.eq.f32.partialorder %v349, 8.507059e+37
        %v351 = vand.u32 %v297, 2147483648
        %v352 = vor.u32 1.1754944e-38, %v351
        %v353 = vsel %vm350, %v352, %v348
        %v354 = vmul.f32 %v324, %v353
        %v355 = vmul.f32 %v339, 0.99998665
        %v356 = vmul.f32 %v354, 0.99998665
        %v357 = vadd.f32 %v355, 3.3333333e-06
        %v358 = vadd.f32 %v356, 3.3333333e-06
        %v359 = vadd.f32 %v357, 1e-05
        %v360 = vadd.f32 %v358, 1e-05
        %v361 = vlog2.pop %v359
        %v362 = vmul.f32 %v361, 0.6931472
        %v363 = vlog2.pop %v360
        %v364 = vmul.f32 %v363, 0.6931472
        %v365 = vsub.f32 1.0, %v359
        %v366 = vsub.f32 1.0, %v360
        %v367 = vmul.f32 %v365, %v365
        %v368 = vmul.f32 %v366, %v366
        %v369 = vsub.f32 0.0, %v367
        %v370 = vsub.f32 0.0, %v368
        %v371 = vmul.f32 %v369, %v362
        %v372 = vmul.f32 %v370, %v364
        %s373 = smul.u32 %s25, 256
        %v374 = vlaneseq
        %v375 = vand.u32 %v374, 127
        %v376 = vadd.s32 %v375, 128
        %v377 = vstv %s373
        %v378 = vadd.s32 %v377, %v375
        %v379 = vadd.s32 %v377, %v376
        %vm380 = vcmp.lt.s32.totalorder %v378, 256
        %vm381 = vcmp.lt.s32.totalorder %v379, 256
        %v382 = vsel %vm380, %v371, 0.0
        %v383 = vsel %vm381, %v372, 0.0
        %v384 = vld [vmem:[#allocation2] sm:$0x3]
        %v387 = vrot.slane %v383, 7
        %vm388 = vcmask 1040384
        %v389 = vsel %vm388, %v382, %v387
        %v391 = vadd.f32 %v384, %v389
        %v392 = vlaneseq
        %vm393 = vcmp.ge.s32.totalorder %v392, 0
        %vm394 = vcmp.lt.s32.totalorder %v392, 256
        %vm395 = vmand %vm393, %vm394
        %396 = vst.msk [vmem:[#allocation2] sm:$0x3] %vm395, %v391
        // Predicated region
        $region41: #{tpu_custom_call.1} parent=31 // pred_check
          %p397 = pneg %p238
        $region42: #{tpu_custom_call.1} parent=31 // pred_check_branch
          %399 = sbr.rel (%p397) target = $region44
        $region43: #{tpu_custom_call.1} parent=31 // pred_region
          %vm400 = vcmp.eq.s32.totalorder %v375, 0
          %v401 = vld [vmem:[#allocation2] sm:$0x3]
          %v403 = vperm.slane %v401, 0
          %v404 = vperm.slane %v401, 1
          %v407 = vsel %vm388, %v403, 0.0
          %v408 = vsel %vm388, %v404, 0.0
          %v409 = vadd.f32 %v407, %v408
          %410 = vadd.xlane.f32.xlu0 %v409
          %v411 = vpop.xlane.xlu0 %410
          %v412 = vrot.slane %v411, 4
          %v413 = vadd.f32 %v411, %v412
          %v414 = vrot.slane %v413, 2
          %v415 = vadd.f32 %v413, %v414
          %v416 = vrot.slane %v415, 1
          %v417 = vadd.f32 %v415, %v416
          %s418 = vtos %v417
          %v419 = vstv %s418
          %v420 = vsel %vm400, %v419, 0.0
          %421 = vst [vmem:[%s227] sm:$0x1] %v420
        $region44: #{tpu_custom_call.1} parent=31 // pred_fallthru
          _
        %s422 = sand.u32 %s117, 1
        %s423 = scalar_lea.sflag [#allocation5], %s422
        %s424 = sand.u32 %s117, 1
        %s425 = scalar_lea.vmem [#allocation6], %s424
        // Predicated region
        $region45: #{tpu_custom_call.1} parent=31 // pred_check
          %p426 = pneg %p127
        $region46: #{tpu_custom_call.1} parent=31 // pred_check_branch
          %428 = sbr.rel (%p426) target = $region48
        $region47: #{tpu_custom_call.1} parent=31 // pred_region
          %430 = vsyncadd %s423, 0
          %s431 = scalar_lea.hbm %s3, %s24
          %s433 = sshll.u32 %s425, 4
          %s434 = int_to_ptr.vmem [resolvable:$true] %s433
          %s435 = sshll.u32 %s431, 4
          %s436 = int_to_ptr.hbm [resolvable:$true] %s435
          %438 = dma.vmem_to_hbm [thread:$0]  %s434, 16, %s436, %s423
        $region48: #{tpu_custom_call.1} parent=31 // pred_fallthru
          _
      $region32: #{tpu_custom_call.1} parent=5 // pred_fallthru
        _
      %p439 = scmp.le.s32.totalorder 2, %s15
      // Predicated region
      $region49: #{tpu_custom_call.1} parent=5 // pred_check
        %p440 = pneg %p439
      $region50: #{tpu_custom_call.1} parent=5 // pred_check_branch
        %442 = sbr.rel (%p440) target = $region52
      $region51: #{tpu_custom_call.1} parent=5 // pred_region
        %s443 = ssub.s32 %s15, 2
        // Predicated region
        $region53: #{tpu_custom_call.1} parent=51 // pred_check
          %p444 = pneg %p133
        $region54: #{tpu_custom_call.1} parent=51 // pred_check_branch
          %446 = sbr.rel (%p444) target = $region56
        $region55: #{tpu_custom_call.1} parent=51 // pred_region
          %s447 = sand.u32 %s118, 1
          %s448 = scalar_lea.sflag [#allocation5], %s447
          %s449 = sand.u32 %s118, 1
          %s450 = scalar_lea.vmem [#allocation6], %s449
          %452 = dma.done %s448, 16
        $region56: #{tpu_custom_call.1} parent=51 // pred_fallthru
          _
      $region52: #{tpu_custom_call.1} parent=5 // pred_fallthru
        _
    $region6: #{tpu_custom_call.1} parent=1 // loop_footer
      %s19 = sadd.s32 1, %s15
    $region7: #{tpu_custom_call.1} parent=1 // loop_footer_branch
      %14 = sbr.rel target = $region3
    $region8: #{tpu_custom_call.1} parent=1 // loop_exit
      _
    %453 = vsyncpa [#allocation4], 1
    %s454 = scalar_lea.sflag [#allocation4], 1
    %455 = vsyncpa %s454, 1
    %456 = vsyncpa [#allocation5], 1
    %s457 = scalar_lea.sflag [#allocation5], 1
    %458 = vsyncpa %s457, 1

</llo_original>
